<compile_context>
chip_gen: v6e
topology: v6e:2x2x1
jax: 0.10.0
libtpu: 0.0.40
codegen_flags: <defaults>
</compile_context>

<pallas_src>
import jax
import jax.numpy as jnp
from jax.experimental import pallas as pl
from jax.experimental.pallas import tpu as pltpu


def _round_up(x, m):
    return (x + m - 1) // m * m


def _lambda_qfunc_kernel(
    xs_ref, xa_ref,
    w1s_ref, w1a_ref, b1_ref,
    w2_ref, b2_ref,
    w3_ref, b3_ref,
    wh_ref, bh_ref,
    out_ref,
):
    # Layer 1 with split input (state / action) -- equivalent to concat @ W1.
    h = jnp.dot(xs_ref[...], w1s_ref[...], preferred_element_type=jnp.float32)
    h = h + jnp.dot(xa_ref[...], w1a_ref[...], preferred_element_type=jnp.float32)
    h = jnp.maximum(h + b1_ref[...], 0.0)
    # Layers 2 and 3: Linear -> ReLU (MXU matmul + VPU relu).
    h = jnp.maximum(
        jnp.dot(h, w2_ref[...], preferred_element_type=jnp.float32) + b2_ref[...], 0.0)
    h = jnp.maximum(
        jnp.dot(h, w3_ref[...], preferred_element_type=jnp.float32) + b3_ref[...], 0.0)
    # Fused heads: one lane-dense (TB, 128*k) result; q / lambda sliced in wrapper.
    out_ref[...] = (
        jnp.dot(h, wh_ref[...], preferred_element_type=jnp.float32) + bh_ref[...])


def pack_params(raw_params, state_dim, action_dim, feature_dim, hidden_size):
    """Zero-pad and fuse raw (torch-layout) params into kernel-friendly slabs.

    Padding is mathematically inert: padded weight rows/cols and biases are zero,
    and ReLU(0) = 0, so padded hidden lanes stay exactly zero through the trunk.
    """
    w1, b1, w2, b2, w3, b3, wq, bq, wl, bl = raw_params
    hp = _round_up(hidden_size, 128)            # padded hidden width (lanes)
    op = _round_up(1 + feature_dim, 128)        # padded fused-head width (lanes)

    def pad2(a, rows, cols):
        a = a.reshape((-1, a.shape[-1])) if a.ndim == 2 else a.reshape(1, -1)
        return jnp.pad(a, ((0, rows - a.shape[0]), (0, cols - a.shape[1])))

    w1s = pad2(w1[:state_dim], state_dim, hp)
    w1a = pad2(w1[state_dim:], action_dim, hp)
    b1p = pad2(b1, 1, hp)
    w2p = pad2(w2, hp, hp)
    b2p = pad2(b2, 1, hp)
    w3p = pad2(w3, hp, hp)
    b3p = pad2(b3, 1, hp)
    wh = pad2(jnp.concatenate([wq, wl], axis=1), hp, op)
    bh = pad2(jnp.concatenate([bq.reshape(1, -1), bl.reshape(1, -1)], axis=1), 1, op)
    return (w1s, w1a, b1p, w2p, b2p, w3p, b3p, wh, bh)


def lambda_qfunc_forward(state, action, packed_params, feature_dim):
    """Pallas implementation of LambdaQFunc.forward.

    Returns ((q, lambdaf), (stop_gradient(q) + 1, stop_gradient(lambdaf) + 1)).
    """
    state = state.astype(jnp.float32)
    action = action.astype(jnp.float32)
    B = state.shape[0]

    # Batch tiling: sublane multiple of 8, tile at most 256 rows, grid over tiles.
    bp = _round_up(B, 8)
    tb = min(bp, 256)
    bp = _round_up(B, tb)
    if bp != B:
        state = jnp.pad(state, ((0, bp - B), (0, 0)))
        action = jnp.pad(action, ((0, bp - B), (0, 0)))

    (w1s, w1a, b1, w2, b2, w3, b3, wh, bh) = packed_params
    ds, da = state.shape[1], action.shape[1]
    op = wh.shape[1]

    def xspec(cols):
        return pl.BlockSpec((tb, cols), lambda i: (i, 0))

    def wspec(shape):
        # Full-array block, constant index_map -> stays VMEM-resident across steps.
        return pl.BlockSpec(shape, lambda i: (0,) * len(shape))

    out = pl.pallas_call(
        _lambda_qfunc_kernel,
        out_shape=jax.ShapeDtypeStruct((bp, op), jnp.float32),
        grid=(bp // tb,),
        in_specs=[
            xspec(ds), xspec(da),
            wspec(w1s.shape), wspec(w1a.shape), wspec(b1.shape),
            wspec(w2.shape), wspec(b2.shape),
            wspec(w3.shape), wspec(b3.shape),
            wspec(wh.shape), wspec(bh.shape),
        ],
        out_specs=pl.BlockSpec((tb, op), lambda i: (i, 0)),
        compiler_params=pltpu.CompilerParams(
            dimension_semantics=("parallel",)),
    )(state, action, w1s, w1a, b1, w2, b2, w3, b3, wh, bh)

    q = out[:B, 0:1]
    lam = out[:B, 1:1 + feature_dim]
    # detach + 1 (forward value identical; stop_gradient gives the detach semantics)
    qd = jax.lax.stop_gradient(q) + 1.0
    lamd = jax.lax.stop_gradient(lam) + 1.0
    return (q, lam), (qd, lamd)


def init_params(key, state_dim, action_dim, feature_dim, hidden_size):
    """PyTorch-Linear-style init: U(-1/sqrt(fan_in), 1/sqrt(fan_in)).

    Weights stored as (in_features, out_features) == torch weight.T; biases (1, out).
    """
    input_dim = state_dim + action_dim

    def linear(key, fan_in, fan_out):
        kw, kb = jax.random.split(key)
        bound = 1.0 / jnp.sqrt(jnp.float32(fan_in))
        w = jax.random.uniform(kw, (fan_in, fan_out), jnp.float32, -bound, bound)
        b = jax.random.uniform(kb, (1, fan_out), jnp.float32, -bound, bound)
        return w, b

    keys = jax.random.split(key, 5)
    w1, b1 = linear(keys[0], input_dim, hidden_size)
    w2, b2 = linear(keys[1], hidden_size, hidden_size)
    w3, b3 = linear(keys[2], hidden_size, hidden_size)
    wq, bq = linear(keys[3], hidden_size, 1)            # head1 -> output_dim_1 = 1
    wl, bl = linear(keys[4], hidden_size, feature_dim)  # head2 -> feature_dim
    return (w1, b1, w2, b2, w3, b3, wq, bq, wl, bl)


if __name__ == "__main__":
    batch = 2
    state_dim = 8
    action_dim = 4
    feature_dim = 8
    hidden_size = 32

    key = jax.random.PRNGKey(0)
    k_state, k_action, k_params = jax.random.split(key, 3)

    state = jax.random.normal(k_state, (batch, state_dim), jnp.float32)
    action = jax.random.normal(k_action, (batch, action_dim), jnp.float32)
    raw_params = init_params(k_params, state_dim, action_dim, feature_dim, hidden_size)
    packed = pack_params(raw_params, state_dim, action_dim, feature_dim, hidden_size)

    (q, lam), (qd, lamd) = lambda_qfunc_forward(state, action, packed, feature_dim)
    jax.block_until_ready((q, lam, qd, lamd))

    # Pure-JAX reference (unpadded, unfused) for correctness.
    x = jnp.concatenate([state, action], axis=1)
    w1, b1, w2, b2, w3, b3, wq, bq, wl, bl = raw_params
    h = jnp.maximum(x @ w1 + b1, 0.0)
    h = jnp.maximum(h @ w2 + b2, 0.0)
    h = jnp.maximum(h @ w3 + b3, 0.0)
    q_ref = h @ wq + bq
    lam_ref = h @ wl + bl

    assert q.shape == (batch, 1) and lam.shape == (batch, feature_dim)
    assert jnp.allclose(q, q_ref, atol=1e-5)
    assert jnp.allclose(lam, lam_ref, atol=1e-5)
    assert jnp.allclose(qd, q_ref + 1.0, atol=1e-5)
    assert jnp.allclose(lamd, lam_ref + 1.0, atol=1e-5)

    print("KERNEL_OK")
</pallas_src>

<mosaic_0001>
module attributes {stable_mosaic.version = 11 : i64} {
  func.func @_lambda_qfunc_kernel(%arg0: i32, %arg1: memref<8x8xf32, #tpu.memory_space<vmem>>, %arg2: memref<8x4xf32, #tpu.memory_space<vmem>>, %arg3: memref<8x128xf32, #tpu.memory_space<vmem>>, %arg4: memref<4x128xf32, #tpu.memory_space<vmem>>, %arg5: memref<1x128xf32, #tpu.memory_space<vmem>>, %arg6: memref<128x128xf32, #tpu.memory_space<vmem>>, %arg7: memref<1x128xf32, #tpu.memory_space<vmem>>, %arg8: memref<128x128xf32, #tpu.memory_space<vmem>>, %arg9: memref<1x128xf32, #tpu.memory_space<vmem>>, %arg10: memref<128x128xf32, #tpu.memory_space<vmem>>, %arg11: memref<1x128xf32, #tpu.memory_space<vmem>>, %arg12: memref<8x128xf32, #tpu.memory_space<vmem>>) attributes {dimension_semantics = [#tpu.dimension_semantics<parallel>], iteration_bounds = array<i64: 1>, scalar_prefetch = 0 : i64, scratch_operands = 0 : i64, tpu.core_type = #tpu.core_type<tc>, window_params = [{transform_indices = @transform_0, window_bounds = array<i64: 8, 8>}, {transform_indices = @transform_1, window_bounds = array<i64: 8, 4>}, {pipeline_mode = #tpu.pipeline_mode<synchronous>, transform_indices = @transform_2, window_bounds = array<i64: 8, 128>}, {pipeline_mode = #tpu.pipeline_mode<synchronous>, transform_indices = @transform_3, window_bounds = array<i64: 4, 128>}, {pipeline_mode = #tpu.pipeline_mode<synchronous>, transform_indices = @transform_4, window_bounds = array<i64: 1, 128>}, {pipeline_mode = #tpu.pipeline_mode<synchronous>, transform_indices = @transform_5, window_bounds = array<i64: 128, 128>}, {pipeline_mode = #tpu.pipeline_mode<synchronous>, transform_indices = @transform_6, window_bounds = array<i64: 1, 128>}, {pipeline_mode = #tpu.pipeline_mode<synchronous>, transform_indices = @transform_7, window_bounds = array<i64: 128, 128>}, {pipeline_mode = #tpu.pipeline_mode<synchronous>, transform_indices = @transform_8, window_bounds = array<i64: 1, 128>}, {pipeline_mode = #tpu.pipeline_mode<synchronous>, transform_indices = @transform_9, window_bounds = array<i64: 128, 128>}, {pipeline_mode = #tpu.pipeline_mode<synchronous>, transform_indices = @transform_10, window_bounds = array<i64: 1, 128>}, {transform_indices = @transform_11, window_bounds = array<i64: 8, 128>}]} {
    %c0 = arith.constant 0 : index
    %c0_0 = arith.constant 0 : index
    %0 = vector.load %arg1[%c0, %c0_0] : memref<8x8xf32, #tpu.memory_space<vmem>>, vector<8x8xf32>
    %c0_1 = arith.constant 0 : index
    %c0_2 = arith.constant 0 : index
    %1 = vector.load %arg3[%c0_1, %c0_2] : memref<8x128xf32, #tpu.memory_space<vmem>>, vector<8x128xf32>
    %cst = arith.constant dense<0.000000e+00> : vector<8x128xf32>
    %2 = tpu.matmul %0, %1, %cst {dimension_numbers = #tpu.dot_dimension_numbers<[1], [0], [0], [1], [0, 0, 1, 1], [], []>} : vector<8x8xf32>, vector<8x128xf32>, vector<8x128xf32> -> vector<8x128xf32>
    %c0_3 = arith.constant 0 : index
    %c0_4 = arith.constant 0 : index
    %3 = vector.load %arg2[%c0_3, %c0_4] : memref<8x4xf32, #tpu.memory_space<vmem>>, vector<8x4xf32>
    %c0_5 = arith.constant 0 : index
    %c0_6 = arith.constant 0 : index
    %4 = vector.load %arg4[%c0_5, %c0_6] : memref<4x128xf32, #tpu.memory_space<vmem>>, vector<4x128xf32>
    %cst_7 = arith.constant dense<0.000000e+00> : vector<8x128xf32>
    %5 = tpu.matmul %3, %4, %cst_7 {dimension_numbers = #tpu.dot_dimension_numbers<[1], [0], [0], [1], [0, 0, 1, 1], [], []>} : vector<8x4xf32>, vector<4x128xf32>, vector<8x128xf32> -> vector<8x128xf32>
    %6 = arith.addf %2, %5 : vector<8x128xf32>
    %c0_8 = arith.constant 0 : index
    %c0_9 = arith.constant 0 : index
    %7 = vector.load %arg5[%c0_8, %c0_9] : memref<1x128xf32, #tpu.memory_space<vmem>>, vector<1x128xf32>
    %8 = vector.broadcast %7 : vector<1x128xf32> to vector<8x128xf32>
    %9 = arith.addf %6, %8 : vector<8x128xf32>
    %cst_10 = arith.constant 0.000000e+00 : f32
    %10 = vector.broadcast %cst_10 : f32 to vector<8x128xf32>
    %11 = arith.maximumf %9, %10 : vector<8x128xf32>
    %c0_11 = arith.constant 0 : index
    %c0_12 = arith.constant 0 : index
    %12 = vector.load %arg6[%c0_11, %c0_12] : memref<128x128xf32, #tpu.memory_space<vmem>>, vector<128x128xf32>
    %cst_13 = arith.constant dense<0.000000e+00> : vector<8x128xf32>
    %13 = tpu.matmul %11, %12, %cst_13 {dimension_numbers = #tpu.dot_dimension_numbers<[1], [0], [0], [1], [0, 0, 1, 1], [], []>} : vector<8x128xf32>, vector<128x128xf32>, vector<8x128xf32> -> vector<8x128xf32>
    %c0_14 = arith.constant 0 : index
    %c0_15 = arith.constant 0 : index
    %14 = vector.load %arg7[%c0_14, %c0_15] : memref<1x128xf32, #tpu.memory_space<vmem>>, vector<1x128xf32>
    %15 = vector.broadcast %14 : vector<1x128xf32> to vector<8x128xf32>
    %16 = arith.addf %13, %15 : vector<8x128xf32>
    %cst_16 = arith.constant 0.000000e+00 : f32
    %17 = vector.broadcast %cst_16 : f32 to vector<8x128xf32>
    %18 = arith.maximumf %16, %17 : vector<8x128xf32>
    %c0_17 = arith.constant 0 : index
    %c0_18 = arith.constant 0 : index
    %19 = vector.load %arg8[%c0_17, %c0_18] : memref<128x128xf32, #tpu.memory_space<vmem>>, vector<128x128xf32>
    %cst_19 = arith.constant dense<0.000000e+00> : vector<8x128xf32>
    %20 = tpu.matmul %18, %19, %cst_19 {dimension_numbers = #tpu.dot_dimension_numbers<[1], [0], [0], [1], [0, 0, 1, 1], [], []>} : vector<8x128xf32>, vector<128x128xf32>, vector<8x128xf32> -> vector<8x128xf32>
    %c0_20 = arith.constant 0 : index
    %c0_21 = arith.constant 0 : index
    %21 = vector.load %arg9[%c0_20, %c0_21] : memref<1x128xf32, #tpu.memory_space<vmem>>, vector<1x128xf32>
    %22 = vector.broadcast %21 : vector<1x128xf32> to vector<8x128xf32>
    %23 = arith.addf %20, %22 : vector<8x128xf32>
    %cst_22 = arith.constant 0.000000e+00 : f32
    %24 = vector.broadcast %cst_22 : f32 to vector<8x128xf32>
    %25 = arith.maximumf %23, %24 : vector<8x128xf32>
    %c0_23 = arith.constant 0 : index
    %c0_24 = arith.constant 0 : index
    %26 = vector.load %arg10[%c0_23, %c0_24] : memref<128x128xf32, #tpu.memory_space<vmem>>, vector<128x128xf32>
    %cst_25 = arith.constant dense<0.000000e+00> : vector<8x128xf32>
    %27 = tpu.matmul %25, %26, %cst_25 {dimension_numbers = #tpu.dot_dimension_numbers<[1], [0], [0], [1], [0, 0, 1, 1], [], []>} : vector<8x128xf32>, vector<128x128xf32>, vector<8x128xf32> -> vector<8x128xf32>
    %c0_26 = arith.constant 0 : index
    %c0_27 = arith.constant 0 : index
    %28 = vector.load %arg11[%c0_26, %c0_27] : memref<1x128xf32, #tpu.memory_space<vmem>>, vector<1x128xf32>
    %29 = vector.broadcast %28 : vector<1x128xf32> to vector<8x128xf32>
    %30 = arith.addf %27, %29 : vector<8x128xf32>
    %c0_28 = arith.constant 0 : index
    %c0_29 = arith.constant 0 : index
    %31 = vector.load %arg12[%c0_28, %c0_29] : memref<8x128xf32, #tpu.memory_space<vmem>>, vector<8x128xf32>
    tpu.vector_store %arg12[%c0_28, %c0_29], %30 {strides = array<i32>} : memref<8x128xf32, #tpu.memory_space<vmem>>, vector<8x128xf32>,
    return
  }
  func.func @transform_0(%arg0: i32) -> (i32, i32) {
    %c0_i32 = arith.constant 0 : i32
    %c0_i32_0 = arith.constant 0 : i32
    return %arg0, %c0_i32 : i32, i32
  }
  func.func @transform_1(%arg0: i32) -> (i32, i32) {
    %c0_i32 = arith.constant 0 : i32
    %c0_i32_0 = arith.constant 0 : i32
    return %arg0, %c0_i32 : i32, i32
  }
  func.func @transform_2(%arg0: i32) -> (i32, i32) {
    %c0_i32 = arith.constant 0 : i32
    %c0_i32_0 = arith.constant 0 : i32
    %c0_i32_1 = arith.constant 0 : i32
    return %c0_i32, %c0_i32_0 : i32, i32
  }
  func.func @transform_3(%arg0: i32) -> (i32, i32) {
    %c0_i32 = arith.constant 0 : i32
    %c0_i32_0 = arith.constant 0 : i32
    %c0_i32_1 = arith.constant 0 : i32
    return %c0_i32, %c0_i32_0 : i32, i32
  }
  func.func @transform_4(%arg0: i32) -> (i32, i32) {
    %c0_i32 = arith.constant 0 : i32
    %c0_i32_0 = arith.constant 0 : i32
    %c0_i32_1 = arith.constant 0 : i32
    return %c0_i32, %c0_i32_0 : i32, i32
  }
  func.func @transform_5(%arg0: i32) -> (i32, i32) {
    %c0_i32 = arith.constant 0 : i32
    %c0_i32_0 = arith.constant 0 : i32
    %c0_i32_1 = arith.constant 0 : i32
    return %c0_i32, %c0_i32_0 : i32, i32
  }
  func.func @transform_6(%arg0: i32) -> (i32, i32) {
    %c0_i32 = arith.constant 0 : i32
    %c0_i32_0 = arith.constant 0 : i32
    %c0_i32_1 = arith.constant 0 : i32
    return %c0_i32, %c0_i32_0 : i32, i32
  }
  func.func @transform_7(%arg0: i32) -> (i32, i32) {
    %c0_i32 = arith.constant 0 : i32
    %c0_i32_0 = arith.constant 0 : i32
    %c0_i32_1 = arith.constant 0 : i32
    return %c0_i32, %c0_i32_0 : i32, i32
  }
  func.func @transform_8(%arg0: i32) -> (i32, i32) {
    %c0_i32 = arith.constant 0 : i32
    %c0_i32_0 = arith.constant 0 : i32
    %c0_i32_1 = arith.constant 0 : i32
    return %c0_i32, %c0_i32_0 : i32, i32
  }
  func.func @transform_9(%arg0: i32) -> (i32, i32) {
    %c0_i32 = arith.constant 0 : i32
    %c0_i32_0 = arith.constant 0 : i32
    %c0_i32_1 = arith.constant 0 : i32
    return %c0_i32, %c0_i32_0 : i32, i32
  }
  func.func @transform_10(%arg0: i32) -> (i32, i32) {
    %c0_i32 = arith.constant 0 : i32
    %c0_i32_0 = arith.constant 0 : i32
    %c0_i32_1 = arith.constant 0 : i32
    return %c0_i32, %c0_i32_0 : i32, i32
  }
  func.func @transform_11(%arg0: i32) -> (i32, i32) {
    %c0_i32 = arith.constant 0 : i32
    %c0_i32_0 = arith.constant 0 : i32
    return %arg0, %c0_i32 : i32, i32
  }
}

</mosaic_0001>

<llo_original>
// kernel: tpu_custom_call.1
$region0: #{tpu_custom_call.1}
  #allocation0 [shape = 'u32[]', space=smem, size = 0x4, offset = 0x4, fixed_abs, tag = 'smem constant byte address 0x4 - core index']
  #allocation1 [shape = 'u32[144,128]{1,0:T(1,128)}', space=vmem, size = 0x12000, scoped, tag = 'internal scratch']
  %s0 = inlined_call_operand.vmem [shape: f32[8,8], index: 0, kind: input, shape index: {}]
  %s1 = inlined_call_operand.vmem [shape: f32[8,4], index: 1, kind: input, shape index: {}]
  %s2 = inlined_call_operand.hbm [shape: f32[8,128], index: 2, kind: input, shape index: {}]
  %s3 = inlined_call_operand.vmem [shape: f32[4,128], index: 3, kind: input, shape index: {}]
  %s4 = inlined_call_operand.vmem [shape: f32[1,128], index: 4, kind: input, shape index: {}]
  %s5 = inlined_call_operand.hbm [shape: f32[128,128], index: 5, kind: input, shape index: {}]
  %s6 = inlined_call_operand.vmem [shape: f32[1,128], index: 6, kind: input, shape index: {}]
  %s7 = inlined_call_operand.hbm [shape: f32[128,128], index: 7, kind: input, shape index: {}]
  %s8 = inlined_call_operand.vmem [shape: f32[1,128], index: 8, kind: input, shape index: {}]
  %s9 = inlined_call_operand.hbm [shape: f32[128,128], index: 9, kind: input, shape index: {}]
  %s10 = inlined_call_operand.vmem [shape: f32[1,128], index: 10, kind: input, shape index: {}]
  %s11 = inlined_call_operand.hbm [shape: f32[8,128], index: 11, kind: output, shape index: {}]
  %s12 = sld [smem:[#allocation0]]
  $region70: #{tpu_custom_call.1} parent=0
    _
  %s14 = ssub.s32 1, %s12
  %s15 = scalar_select 0, %s14, %s12
  $region1: #{tpu_custom_call.1} parent=0
    #allocation2 [shape = 'u8[4096]{0}', space=vmem, size = 0x1000, scoped, tag = 'input window, operand 2, single buffered']
    #allocation3 [shape = 's32[1]{0}', space=sflag, size = 0x4, scoped, tag = 'scoped memory for tpu_custom_call.1']
    #allocation4 [shape = 's32[1]{0}', space=sflag, size = 0x4, scoped, tag = 'scoped memory for tpu_custom_call.1']
    #allocation5 [shape = 'u8[65536]{0}', space=vmem, size = 0x10000, scoped, tag = 'input window, operand 5, single buffered']
    #allocation6 [shape = 's32[1]{0}', space=sflag, size = 0x4, scoped, tag = 'scoped memory for tpu_custom_call.1']
    #allocation7 [shape = 'u8[65536]{0}', space=vmem, size = 0x10000, scoped, tag = 'input window, operand 7, single buffered']
    #allocation8 [shape = 'u8[65536]{0}', space=vmem, size = 0x10000, scoped, tag = 'input window, operand 9, single buffered']
    #allocation9 [shape = 's32[1]{0}', space=sflag, size = 0x4, scoped, tag = 'scoped memory for tpu_custom_call.1']
    #allocation10 [shape = 'u8[4096]{0}', space=vmem, size = 0x1000, scoped, tag = 'output window, operand 0, single buffered']
    %16 = vsyncpa [#allocation3], 0
    %17 = vsyncpa [#allocation6], 0
    %18 = vsyncpa [#allocation9], 0
    %19 = vsyncpa [#allocation4], 0
    // Predicated region
    $region2: #{tpu_custom_call.1} parent=1 // pred_check
      _
    $region3: #{tpu_custom_call.1} parent=1 // pred_check_branch
      %21 = sbr.rel (0) target = $region5
    $region4: #{tpu_custom_call.1} parent=1 // pred_region
      _
    $region5: #{tpu_custom_call.1} parent=1 // pred_fallthru
      _
    // Predicated region
    $region6: #{tpu_custom_call.1} parent=1 // pred_check
      _
    $region7: #{tpu_custom_call.1} parent=1 // pred_check_branch
      %23 = sbr.rel (0) target = $region9
    $region8: #{tpu_custom_call.1} parent=1 // pred_region
      _
    $region9: #{tpu_custom_call.1} parent=1 // pred_fallthru
      _
    // Predicated region
    $region10: #{tpu_custom_call.1} parent=1 // pred_check
      _
    $region11: #{tpu_custom_call.1} parent=1 // pred_check_branch
      %25 = sbr.rel (0) target = $region13
    $region12: #{tpu_custom_call.1} parent=1 // pred_region
      %s27 = ssub.s32 128, 128
      %28 = vsyncadd [#allocation3], %s27
      %s30 = sshll.u32 [#allocation2], 4
      %s31 = int_to_ptr.vmem [resolvable:$true] %s30
      %33 = dma.hbm_to_vmem [thread:$0]  %s2, 128, %s31, [#allocation3]
    $region13: #{tpu_custom_call.1} parent=1 // pred_fallthru
      _
    // Predicated region
    $region14: #{tpu_custom_call.1} parent=1 // pred_check
      _
    $region15: #{tpu_custom_call.1} parent=1 // pred_check_branch
      %35 = sbr.rel (0) target = $region17
    $region16: #{tpu_custom_call.1} parent=1 // pred_region
      _
    $region17: #{tpu_custom_call.1} parent=1 // pred_fallthru
      _
    // Predicated region
    $region18: #{tpu_custom_call.1} parent=1 // pred_check
      _
    $region19: #{tpu_custom_call.1} parent=1 // pred_check_branch
      %37 = sbr.rel (0) target = $region21
    $region20: #{tpu_custom_call.1} parent=1 // pred_region
      _
    $region21: #{tpu_custom_call.1} parent=1 // pred_fallthru
      _
    // Predicated region
    $region22: #{tpu_custom_call.1} parent=1 // pred_check
      _
    $region23: #{tpu_custom_call.1} parent=1 // pred_check_branch
      %39 = sbr.rel (0) target = $region25
    $region24: #{tpu_custom_call.1} parent=1 // pred_region
      %s41 = ssub.s32 2048, 2048
      %42 = vsyncadd [#allocation6], %s41
      %s43 = sshll.u32 [#allocation5], 4
      %s44 = int_to_ptr.vmem [resolvable:$true] %s43
      %49 = dma.hbm_to_vmem [thread:$0]  %s5, 2048, %s44, [#allocation6], 128, 128, 8
    $region25: #{tpu_custom_call.1} parent=1 // pred_fallthru
      _
    // Predicated region
    $region26: #{tpu_custom_call.1} parent=1 // pred_check
      _
    $region27: #{tpu_custom_call.1} parent=1 // pred_check_branch
      %51 = sbr.rel (0) target = $region29
    $region28: #{tpu_custom_call.1} parent=1 // pred_region
      _
    $region29: #{tpu_custom_call.1} parent=1 // pred_fallthru
      _
    // Predicated region
    $region30: #{tpu_custom_call.1} parent=1 // pred_check
      _
    $region31: #{tpu_custom_call.1} parent=1 // pred_check_branch
      %53 = sbr.rel (0) target = $region33
    $region32: #{tpu_custom_call.1} parent=1 // pred_region
      %s55 = ssub.s32 2048, 2048
      %56 = vsyncadd [#allocation6], %s55
      %s57 = sshll.u32 [#allocation7], 4
      %s58 = int_to_ptr.vmem [resolvable:$true] %s57
      %63 = dma.hbm_to_vmem [thread:$0]  %s7, 2048, %s58, [#allocation6], 128, 128, 8
    $region33: #{tpu_custom_call.1} parent=1 // pred_fallthru
      _
    // Predicated region
    $region34: #{tpu_custom_call.1} parent=1 // pred_check
      _
    $region35: #{tpu_custom_call.1} parent=1 // pred_check_branch
      %65 = sbr.rel (0) target = $region37
    $region36: #{tpu_custom_call.1} parent=1 // pred_region
      _
    $region37: #{tpu_custom_call.1} parent=1 // pred_fallthru
      _
    // Predicated region
    $region38: #{tpu_custom_call.1} parent=1 // pred_check
      _
    $region39: #{tpu_custom_call.1} parent=1 // pred_check_branch
      %67 = sbr.rel (0) target = $region41
    $region40: #{tpu_custom_call.1} parent=1 // pred_region
      %s69 = ssub.s32 2048, 2048
      %70 = vsyncadd [#allocation9], %s69
      %s71 = sshll.u32 [#allocation8], 4
      %s72 = int_to_ptr.vmem [resolvable:$true] %s71
      %77 = dma.hbm_to_vmem [thread:$0]  %s9, 2048, %s72, [#allocation9], 128, 128, 8
    $region41: #{tpu_custom_call.1} parent=1 // pred_fallthru
      _
    // Predicated region
    $region42: #{tpu_custom_call.1} parent=1 // pred_check
      _
    $region43: #{tpu_custom_call.1} parent=1 // pred_check_branch
      %79 = sbr.rel (0) target = $region45
    $region44: #{tpu_custom_call.1} parent=1 // pred_region
      _
    $region45: #{tpu_custom_call.1} parent=1 // pred_fallthru
      _
    // Predicated region
    $region46: #{tpu_custom_call.1} parent=1 // pred_check
      _
    $region47: #{tpu_custom_call.1} parent=1 // pred_check_branch
      %81 = sbr.rel (0) target = $region49
    $region48: #{tpu_custom_call.1} parent=1 // pred_region
      %82 = dma.done [#allocation3], 128
    $region49: #{tpu_custom_call.1} parent=1 // pred_fallthru
      _
    // Predicated region
    $region50: #{tpu_custom_call.1} parent=1 // pred_check
      _
    $region51: #{tpu_custom_call.1} parent=1 // pred_check_branch
      %84 = sbr.rel (0) target = $region53
    $region52: #{tpu_custom_call.1} parent=1 // pred_region
      %85 = dma.done [#allocation6], 2048
    $region53: #{tpu_custom_call.1} parent=1 // pred_fallthru
      _
    // Predicated region
    $region54: #{tpu_custom_call.1} parent=1 // pred_check
      _
    $region55: #{tpu_custom_call.1} parent=1 // pred_check_branch
      %87 = sbr.rel (0) target = $region57
    $region56: #{tpu_custom_call.1} parent=1 // pred_region
      %88 = dma.done [#allocation6], 2048
    $region57: #{tpu_custom_call.1} parent=1 // pred_fallthru
      _
    // Predicated region
    $region58: #{tpu_custom_call.1} parent=1 // pred_check
      _
    $region59: #{tpu_custom_call.1} parent=1 // pred_check_branch
      %90 = sbr.rel (0) target = $region61
    $region60: #{tpu_custom_call.1} parent=1 // pred_region
      %91 = dma.done [#allocation9], 2048
    $region61: #{tpu_custom_call.1} parent=1 // pred_fallthru
      _
    %v92 = vld [vmem:[%s0] sm:$0xff]
    %v93 = vld [vmem:[#allocation2] sm:$0xff]
    %v94 = vld [vmem:[%s1] sm:$0xff]
    %v95 = vld [vmem:[%s3] sm:$0xf]
    %vm96 = vcmask 31744
    %v98 = vsel %vm96, %v94, 0
    %vm100 = vcmask 1043456
    %v102 = vsel %vm100, %v95, 0
    %104 = vmatprep.subr.mxu0 0.0
    %105 = vmatpush1.msra.mxu0 0.0
    %106 = vmatprep.subr.mxu0 0.0
    %107 = vmatpush1.msra.mxu0 0.0
    %108 = vmatprep.subr.mxu0 0.0
    %109 = vmatpush1.msra.mxu0 0.0
    %110 = vmatprep.subr.mxu0 0.0
    %111 = vmatpush1.msra.mxu0 0.0
    %112 = vmatprep.subr.mxu0 0.0
    %113 = vmatpush1.msra.mxu0 0.0
    %114 = vmatprep.subr.mxu0 0.0
    %115 = vmatpush1.msra.mxu0 0.0
    %116 = vmatprep.subr.mxu0 0.0
    %117 = vmatpush1.msra.mxu0 0.0
    %118 = vmatprep.subr.mxu0 0.0
    %119 = vmatpush1.msra.mxu0 0.0
    %120 = vmatprep.subr.mxu0 0.0
    %121 = vmatpush1.msra.mxu0 0.0
    %122 = vmatprep.subr.mxu0 0.0
    %123 = vmatpush1.msra.mxu0 0.0
    %124 = vmatprep.subr.mxu0 0.0
    %125 = vmatpush1.msra.mxu0 0.0
    %126 = vmatprep.subr.mxu0 0.0
    %127 = vmatpush1.msra.mxu0 0.0
    %128 = vmatprep.subr.mxu0 0.0
    %129 = vmatpush1.msra.mxu0 0.0
    %130 = vmatprep.subr.mxu0 0.0
    %131 = vmatpush1.msra.mxu0 0.0
    %132 = vmatprep.subr.mxu0 0.0
    %133 = vmatpush1.msra.mxu0 0.0
    %134 = vmatprep.subr.mxu0 0.0
    %135 = vmatpush1.msra.mxu0 %v102
    %136 = vmatprep.subr.mxu0 0.0
    %137 = vmatpush2.msra.mxu0 0.0
    %138 = vmatprep.subr.mxu0 0.0
    %139 = vmatpush2.msra.mxu0 0.0
    %140 = vmatprep.subr.mxu0 0.0
    %141 = vmatpush2.msra.mxu0 0.0
    %142 = vmatprep.subr.mxu0 0.0
    %143 = vmatpush2.msra.mxu0 0.0
    %144 = vmatprep.subr.mxu0 0.0
    %145 = vmatpush2.msra.mxu0 0.0
    %146 = vmatprep.subr.mxu0 0.0
    %147 = vmatpush2.msra.mxu0 0.0
    %148 = vmatprep.subr.mxu0 0.0
    %149 = vmatpush2.msra.mxu0 0.0
    %150 = vmatprep.subr.mxu0 0.0
    %151 = vmatpush2.msra.mxu0 0.0
    %152 = vmatprep.subr.mxu0 0.0
    %153 = vmatpush2.msra.mxu0 0.0
    %154 = vmatprep.subr.mxu0 0.0
    %155 = vmatpush2.msra.mxu0 0.0
    %156 = vmatprep.subr.mxu0 0.0
    %157 = vmatpush2.msra.mxu0 0.0
    %158 = vmatprep.subr.mxu0 0.0
    %159 = vmatpush2.msra.mxu0 0.0
    %160 = vmatprep.subr.mxu0 0.0
    %161 = vmatpush2.msra.mxu0 0.0
    %162 = vmatprep.subr.mxu0 0.0
    %163 = vmatpush2.msra.mxu0 0.0
    %164 = vmatprep.subr.mxu0 0.0
    %165 = vmatpush2.msra.mxu0 0.0
    %166 = vmatprep.subr.mxu0 0.0
    %167 = vmatpush2.msra.mxu0 0.0
    %168 = vmatprep.mubr.f32.mxu0 0.0
    %169 = vmatmul.mubr.f32.gmra.mxu0 %v98
    %v170 = vpop.f32.mrf.mxu0
    %v171 = vadd.f32 0.0, %v170
    %v172 = vpop.f32.mrf.mxu0
    %173 = vdwg.mxu0
    %vm174 = vcmask 64512
    %v176 = vsel %vm174, %v92, 0
    %178 = vmatprep.subr.mxu0 0.0
    %179 = vmatpush1.msra.mxu0 0.0
    %180 = vmatprep.subr.mxu0 0.0
    %181 = vmatpush1.msra.mxu0 0.0
    %182 = vmatprep.subr.mxu0 0.0
    %183 = vmatpush1.msra.mxu0 0.0
    %184 = vmatprep.subr.mxu0 0.0
    %185 = vmatpush1.msra.mxu0 0.0
    %186 = vmatprep.subr.mxu0 0.0
    %187 = vmatpush1.msra.mxu0 0.0
    %188 = vmatprep.subr.mxu0 0.0
    %189 = vmatpush1.msra.mxu0 0.0
    %190 = vmatprep.subr.mxu0 0.0
    %191 = vmatpush1.msra.mxu0 0.0
    %192 = vmatprep.subr.mxu0 0.0
    %193 = vmatpush1.msra.mxu0 0.0
    %194 = vmatprep.subr.mxu0 0.0
    %195 = vmatpush1.msra.mxu0 0.0
    %196 = vmatprep.subr.mxu0 0.0
    %197 = vmatpush1.msra.mxu0 0.0
    %198 = vmatprep.subr.mxu0 0.0
    %199 = vmatpush1.msra.mxu0 0.0
    %200 = vmatprep.subr.mxu0 0.0
    %201 = vmatpush1.msra.mxu0 0.0
    %202 = vmatprep.subr.mxu0 0.0
    %203 = vmatpush1.msra.mxu0 0.0
    %204 = vmatprep.subr.mxu0 0.0
    %205 = vmatpush1.msra.mxu0 0.0
    %206 = vmatprep.subr.mxu0 0.0
    %207 = vmatpush1.msra.mxu0 0.0
    %208 = vmatprep.subr.mxu0 0.0
    %209 = vmatpush1.msra.mxu0 %v93
    %210 = vmatprep.subr.mxu0 0.0
    %211 = vmatpush2.msra.mxu0 0.0
    %212 = vmatprep.subr.mxu0 0.0
    %213 = vmatpush2.msra.mxu0 0.0
    %214 = vmatprep.subr.mxu0 0.0
    %215 = vmatpush2.msra.mxu0 0.0
    %216 = vmatprep.subr.mxu0 0.0
    %217 = vmatpush2.msra.mxu0 0.0
    %218 = vmatprep.subr.mxu0 0.0
    %219 = vmatpush2.msra.mxu0 0.0
    %220 = vmatprep.subr.mxu0 0.0
    %221 = vmatpush2.msra.mxu0 0.0
    %222 = vmatprep.subr.mxu0 0.0
    %223 = vmatpush2.msra.mxu0 0.0
    %224 = vmatprep.subr.mxu0 0.0
    %225 = vmatpush2.msra.mxu0 0.0
    %226 = vmatprep.subr.mxu0 0.0
    %227 = vmatpush2.msra.mxu0 0.0
    %228 = vmatprep.subr.mxu0 0.0
    %229 = vmatpush2.msra.mxu0 0.0
    %230 = vmatprep.subr.mxu0 0.0
    %231 = vmatpush2.msra.mxu0 0.0
    %232 = vmatprep.subr.mxu0 0.0
    %233 = vmatpush2.msra.mxu0 0.0
    %234 = vmatprep.subr.mxu0 0.0
    %235 = vmatpush2.msra.mxu0 0.0
    %236 = vmatprep.subr.mxu0 0.0
    %237 = vmatpush2.msra.mxu0 0.0
    %238 = vmatprep.subr.mxu0 0.0
    %239 = vmatpush2.msra.mxu0 0.0
    %240 = vmatprep.subr.mxu0 0.0
    %241 = vmatpush2.msra.mxu0 0.0
    %242 = vmatprep.mubr.f32.mxu0 0.0
    %243 = vmatmul.mubr.f32.gmra.mxu0 %v176
    %v244 = vpop.f32.mrf.mxu0
    %v245 = vadd.f32 %v171, %v244
    %v246 = vpop.f32.mrf.mxu0
    %247 = vdwg.mxu0
    %v248 = vld [vmem:[%s4] sm:$0x1]
    %v250 = vlaneseq
    %v251 = vshrl.u32 %v250, 7
    %v252 = vsub.s32 0, %v251
    %v253 = vrot.slane %v248, %v252
    %v255 = vadd.f32 %v245, %v253
    %v256 = vmax.f32 %v255, 0.0
    %v257 = vld [vmem:[#allocation5] sm:$0xff]
    %v258 = vld [vmem:[#allocation5 + $0x8] sm:$0xff]
    %v259 = vld [vmem:[#allocation5 + $0x10] sm:$0xff]
    %v260 = vld [vmem:[#allocation5 + $0x18] sm:$0xff]
    %v261 = vld [vmem:[#allocation5 + $0x20] sm:$0xff]
    %v262 = vld [vmem:[#allocation5 + $0x28] sm:$0xff]
    %v263 = vld [vmem:[#allocation5 + $0x30] sm:$0xff]
    %v264 = vld [vmem:[#allocation5 + $0x38] sm:$0xff]
    %v265 = vld [vmem:[#allocation5 + $0x40] sm:$0xff]
    %v266 = vld [vmem:[#allocation5 + $0x48] sm:$0xff]
    %v267 = vld [vmem:[#allocation5 + $0x50] sm:$0xff]
    %v268 = vld [vmem:[#allocation5 + $0x58] sm:$0xff]
    %v269 = vld [vmem:[#allocation5 + $0x60] sm:$0xff]
    %v270 = vld [vmem:[#allocation5 + $0x68] sm:$0xff]
    %v271 = vld [vmem:[#allocation5 + $0x70] sm:$0xff]
    %v272 = vld [vmem:[#allocation5 + $0x78] sm:$0xff]
    %v273 = vld [vmem:[%s6] sm:$0x1]
    %v275 = vlaneseq
    %v276 = vshrl.u32 %v275, 7
    %v277 = vsub.s32 0, %v276
    %v278 = vrot.slane %v273, %v277
    %280 = vmatprep.subr.mxu0 0.0
    %281 = vmatpush1.msra.mxu0 %v272
    %282 = vmatprep.subr.mxu0 0.0
    %283 = vmatpush1.msra.mxu0 %v271
    %284 = vmatprep.subr.mxu0 0.0
    %285 = vmatpush1.msra.mxu0 %v270
    %286 = vmatprep.subr.mxu0 0.0
    %287 = vmatpush1.msra.mxu0 %v269
    %288 = vmatprep.subr.mxu0 0.0
    %289 = vmatpush1.msra.mxu0 %v268
    %290 = vmatprep.subr.mxu0 0.0
    %291 = vmatpush1.msra.mxu0 %v267
    %292 = vmatprep.subr.mxu0 0.0
    %293 = vmatpush1.msra.mxu0 %v266
    %294 = vmatprep.subr.mxu0 0.0
    %295 = vmatpush1.msra.mxu0 %v265
    %296 = vmatprep.subr.mxu0 0.0
    %297 = vmatpush1.msra.mxu0 %v264
    %298 = vmatprep.subr.mxu0 0.0
    %299 = vmatpush1.msra.mxu0 %v263
    %300 = vmatprep.subr.mxu0 0.0
    %301 = vmatpush1.msra.mxu0 %v262
    %302 = vmatprep.subr.mxu0 0.0
    %303 = vmatpush1.msra.mxu0 %v261
    %304 = vmatprep.subr.mxu0 0.0
    %305 = vmatpush1.msra.mxu0 %v260
    %306 = vmatprep.subr.mxu0 0.0
    %307 = vmatpush1.msra.mxu0 %v259
    %308 = vmatprep.subr.mxu0 0.0
    %309 = vmatpush1.msra.mxu0 %v258
    %310 = vmatprep.subr.mxu0 0.0
    %311 = vmatpush1.msra.mxu0 %v257
    %312 = vmatprep.subr.mxu0 0.0
    %313 = vmatpush2.msra.mxu0 0.0
    %314 = vmatprep.subr.mxu0 0.0
    %315 = vmatpush2.msra.mxu0 0.0
    %316 = vmatprep.subr.mxu0 0.0
    %317 = vmatpush2.msra.mxu0 0.0
    %318 = vmatprep.subr.mxu0 0.0
    %319 = vmatpush2.msra.mxu0 0.0
    %320 = vmatprep.subr.mxu0 0.0
    %321 = vmatpush2.msra.mxu0 0.0
    %322 = vmatprep.subr.mxu0 0.0
    %323 = vmatpush2.msra.mxu0 0.0
    %324 = vmatprep.subr.mxu0 0.0
    %325 = vmatpush2.msra.mxu0 0.0
    %326 = vmatprep.subr.mxu0 0.0
    %327 = vmatpush2.msra.mxu0 0.0
    %328 = vmatprep.subr.mxu0 0.0
    %329 = vmatpush2.msra.mxu0 0.0
    %330 = vmatprep.subr.mxu0 0.0
    %331 = vmatpush2.msra.mxu0 0.0
    %332 = vmatprep.subr.mxu0 0.0
    %333 = vmatpush2.msra.mxu0 0.0
    %334 = vmatprep.subr.mxu0 0.0
    %335 = vmatpush2.msra.mxu0 0.0
    %336 = vmatprep.subr.mxu0 0.0
    %337 = vmatpush2.msra.mxu0 0.0
    %338 = vmatprep.subr.mxu0 0.0
    %339 = vmatpush2.msra.mxu0 0.0
    %340 = vmatprep.subr.mxu0 0.0
    %341 = vmatpush2.msra.mxu0 0.0
    %342 = vmatprep.subr.mxu0 0.0
    %343 = vmatpush2.msra.mxu0 0.0
    %344 = vmatprep.mubr.f32.mxu0 0.0
    %345 = vmatmul.mubr.f32.gmra.mxu0 %v256
    %v346 = vpop.f32.mrf.mxu0
    %v347 = vadd.f32 %v278, %v346
    %v348 = vpop.f32.mrf.mxu0
    %349 = vdwg.mxu0
    %v350 = vmax.f32 %v347, 0.0
    %v351 = vld [vmem:[#allocation7] sm:$0xff]
    %v352 = vld [vmem:[#allocation7 + $0x8] sm:$0xff]
    %v353 = vld [vmem:[#allocation7 + $0x10] sm:$0xff]
    %v354 = vld [vmem:[#allocation7 + $0x18] sm:$0xff]
    %v355 = vld [vmem:[#allocation7 + $0x20] sm:$0xff]
    %v356 = vld [vmem:[#allocation7 + $0x28] sm:$0xff]
    %v357 = vld [vmem:[#allocation7 + $0x30] sm:$0xff]
    %v358 = vld [vmem:[#allocation7 + $0x38] sm:$0xff]
    %v359 = vld [vmem:[#allocation7 + $0x40] sm:$0xff]
    %v360 = vld [vmem:[#allocation7 + $0x48] sm:$0xff]
    %v361 = vld [vmem:[#allocation7 + $0x50] sm:$0xff]
    %v362 = vld [vmem:[#allocation7 + $0x58] sm:$0xff]
    %v363 = vld [vmem:[#allocation7 + $0x60] sm:$0xff]
    %v364 = vld [vmem:[#allocation7 + $0x68] sm:$0xff]
    %v365 = vld [vmem:[#allocation7 + $0x70] sm:$0xff]
    %v366 = vld [vmem:[#allocation7 + $0x78] sm:$0xff]
    %v367 = vld [vmem:[%s8] sm:$0x1]
    %v369 = vlaneseq
    %v370 = vshrl.u32 %v369, 7
    %v371 = vsub.s32 0, %v370
    %v372 = vrot.slane %v367, %v371
    %374 = vmatprep.subr.mxu0 0.0
    %375 = vmatpush1.msra.mxu0 %v366
    %376 = vmatprep.subr.mxu0 0.0
    %377 = vmatpush1.msra.mxu0 %v365
    %378 = vmatprep.subr.mxu0 0.0
    %379 = vmatpush1.msra.mxu0 %v364
    %380 = vmatprep.subr.mxu0 0.0
    %381 = vmatpush1.msra.mxu0 %v363
    %382 = vmatprep.subr.mxu0 0.0
    %383 = vmatpush1.msra.mxu0 %v362
    %384 = vmatprep.subr.mxu0 0.0
    %385 = vmatpush1.msra.mxu0 %v361
    %386 = vmatprep.subr.mxu0 0.0
    %387 = vmatpush1.msra.mxu0 %v360
    %388 = vmatprep.subr.mxu0 0.0
    %389 = vmatpush1.msra.mxu0 %v359
    %390 = vmatprep.subr.mxu0 0.0
    %391 = vmatpush1.msra.mxu0 %v358
    %392 = vmatprep.subr.mxu0 0.0
    %393 = vmatpush1.msra.mxu0 %v357
    %394 = vmatprep.subr.mxu0 0.0
    %395 = vmatpush1.msra.mxu0 %v356
    %396 = vmatprep.subr.mxu0 0.0
    %397 = vmatpush1.msra.mxu0 %v355
    %398 = vmatprep.subr.mxu0 0.0
    %399 = vmatpush1.msra.mxu0 %v354
    %400 = vmatprep.subr.mxu0 0.0
    %401 = vmatpush1.msra.mxu0 %v353
    %402 = vmatprep.subr.mxu0 0.0
    %403 = vmatpush1.msra.mxu0 %v352
    %404 = vmatprep.subr.mxu0 0.0
    %405 = vmatpush1.msra.mxu0 %v351
    %406 = vmatprep.subr.mxu0 0.0
    %407 = vmatpush2.msra.mxu0 0.0
    %408 = vmatprep.subr.mxu0 0.0
    %409 = vmatpush2.msra.mxu0 0.0
    %410 = vmatprep.subr.mxu0 0.0
    %411 = vmatpush2.msra.mxu0 0.0
    %412 = vmatprep.subr.mxu0 0.0
    %413 = vmatpush2.msra.mxu0 0.0
    %414 = vmatprep.subr.mxu0 0.0
    %415 = vmatpush2.msra.mxu0 0.0
    %416 = vmatprep.subr.mxu0 0.0
    %417 = vmatpush2.msra.mxu0 0.0
    %418 = vmatprep.subr.mxu0 0.0
    %419 = vmatpush2.msra.mxu0 0.0
    %420 = vmatprep.subr.mxu0 0.0
    %421 = vmatpush2.msra.mxu0 0.0
    %422 = vmatprep.subr.mxu0 0.0
    %423 = vmatpush2.msra.mxu0 0.0
    %424 = vmatprep.subr.mxu0 0.0
    %425 = vmatpush2.msra.mxu0 0.0
    %426 = vmatprep.subr.mxu0 0.0
    %427 = vmatpush2.msra.mxu0 0.0
    %428 = vmatprep.subr.mxu0 0.0
    %429 = vmatpush2.msra.mxu0 0.0
    %430 = vmatprep.subr.mxu0 0.0
    %431 = vmatpush2.msra.mxu0 0.0
    %432 = vmatprep.subr.mxu0 0.0
    %433 = vmatpush2.msra.mxu0 0.0
    %434 = vmatprep.subr.mxu0 0.0
    %435 = vmatpush2.msra.mxu0 0.0
    %436 = vmatprep.subr.mxu0 0.0
    %437 = vmatpush2.msra.mxu0 0.0
    %438 = vmatprep.mubr.f32.mxu0 0.0
    %439 = vmatmul.mubr.f32.gmra.mxu0 %v350
    %v440 = vpop.f32.mrf.mxu0
    %v441 = vadd.f32 %v372, %v440
    %v442 = vpop.f32.mrf.mxu0
    %443 = vdwg.mxu0
    %v444 = vmax.f32 %v441, 0.0
    %v445 = vld [vmem:[#allocation8] sm:$0xff]
    %v446 = vld [vmem:[#allocation8 + $0x8] sm:$0xff]
    %v447 = vld [vmem:[#allocation8 + $0x10] sm:$0xff]
    %v448 = vld [vmem:[#allocation8 + $0x18] sm:$0xff]
    %v449 = vld [vmem:[#allocation8 + $0x20] sm:$0xff]
    %v450 = vld [vmem:[#allocation8 + $0x28] sm:$0xff]
    %v451 = vld [vmem:[#allocation8 + $0x30] sm:$0xff]
    %v452 = vld [vmem:[#allocation8 + $0x38] sm:$0xff]
    %v453 = vld [vmem:[#allocation8 + $0x40] sm:$0xff]
    %v454 = vld [vmem:[#allocation8 + $0x48] sm:$0xff]
    %v455 = vld [vmem:[#allocation8 + $0x50] sm:$0xff]
    %v456 = vld [vmem:[#allocation8 + $0x58] sm:$0xff]
    %v457 = vld [vmem:[#allocation8 + $0x60] sm:$0xff]
    %v458 = vld [vmem:[#allocation8 + $0x68] sm:$0xff]
    %v459 = vld [vmem:[#allocation8 + $0x70] sm:$0xff]
    %v460 = vld [vmem:[#allocation8 + $0x78] sm:$0xff]
    %v461 = vld [vmem:[%s10] sm:$0x1]
    %v463 = vlaneseq
    %v464 = vshrl.u32 %v463, 7
    %v465 = vsub.s32 0, %v464
    %v466 = vrot.slane %v461, %v465
    %468 = vmatprep.subr.mxu0 0.0
    %469 = vmatpush1.msra.mxu0 %v460
    %470 = vmatprep.subr.mxu0 0.0
    %471 = vmatpush1.msra.mxu0 %v459
    %472 = vmatprep.subr.mxu0 0.0
    %473 = vmatpush1.msra.mxu0 %v458
    %474 = vmatprep.subr.mxu0 0.0
    %475 = vmatpush1.msra.mxu0 %v457
    %476 = vmatprep.subr.mxu0 0.0
    %477 = vmatpush1.msra.mxu0 %v456
    %478 = vmatprep.subr.mxu0 0.0
    %479 = vmatpush1.msra.mxu0 %v455
    %480 = vmatprep.subr.mxu0 0.0
    %481 = vmatpush1.msra.mxu0 %v454
    %482 = vmatprep.subr.mxu0 0.0
    %483 = vmatpush1.msra.mxu0 %v453
    %484 = vmatprep.subr.mxu0 0.0
    %485 = vmatpush1.msra.mxu0 %v452
    %486 = vmatprep.subr.mxu0 0.0
    %487 = vmatpush1.msra.mxu0 %v451
    %488 = vmatprep.subr.mxu0 0.0
    %489 = vmatpush1.msra.mxu0 %v450
    %490 = vmatprep.subr.mxu0 0.0
    %491 = vmatpush1.msra.mxu0 %v449
    %492 = vmatprep.subr.mxu0 0.0
    %493 = vmatpush1.msra.mxu0 %v448
    %494 = vmatprep.subr.mxu0 0.0
    %495 = vmatpush1.msra.mxu0 %v447
    %496 = vmatprep.subr.mxu0 0.0
    %497 = vmatpush1.msra.mxu0 %v446
    %498 = vmatprep.subr.mxu0 0.0
    %499 = vmatpush1.msra.mxu0 %v445
    %500 = vmatprep.subr.mxu0 0.0
    %501 = vmatpush2.msra.mxu0 0.0
    %502 = vmatprep.subr.mxu0 0.0
    %503 = vmatpush2.msra.mxu0 0.0
    %504 = vmatprep.subr.mxu0 0.0
    %505 = vmatpush2.msra.mxu0 0.0
    %506 = vmatprep.subr.mxu0 0.0
    %507 = vmatpush2.msra.mxu0 0.0
    %508 = vmatprep.subr.mxu0 0.0
    %509 = vmatpush2.msra.mxu0 0.0
    %510 = vmatprep.subr.mxu0 0.0
    %511 = vmatpush2.msra.mxu0 0.0
    %512 = vmatprep.subr.mxu0 0.0
    %513 = vmatpush2.msra.mxu0 0.0
    %514 = vmatprep.subr.mxu0 0.0
    %515 = vmatpush2.msra.mxu0 0.0
    %516 = vmatprep.subr.mxu0 0.0
    %517 = vmatpush2.msra.mxu0 0.0
    %518 = vmatprep.subr.mxu0 0.0
    %519 = vmatpush2.msra.mxu0 0.0
    %520 = vmatprep.subr.mxu0 0.0
    %521 = vmatpush2.msra.mxu0 0.0
    %522 = vmatprep.subr.mxu0 0.0
    %523 = vmatpush2.msra.mxu0 0.0
    %524 = vmatprep.subr.mxu0 0.0
    %525 = vmatpush2.msra.mxu0 0.0
    %526 = vmatprep.subr.mxu0 0.0
    %527 = vmatpush2.msra.mxu0 0.0
    %528 = vmatprep.subr.mxu0 0.0
    %529 = vmatpush2.msra.mxu0 0.0
    %530 = vmatprep.subr.mxu0 0.0
    %531 = vmatpush2.msra.mxu0 0.0
    %532 = vmatprep.mubr.f32.mxu0 0.0
    %533 = vmatmul.mubr.f32.gmra.mxu0 %v444
    %v534 = vpop.f32.mrf.mxu0
    %v535 = vadd.f32 %v466, %v534
    %v536 = vpop.f32.mrf.mxu0
    %537 = vdwg.mxu0
    %538 = vst [vmem:[#allocation10] sm:$0xff] %v535
    // Predicated region
    $region62: #{tpu_custom_call.1} parent=1 // pred_check
      _
    $region63: #{tpu_custom_call.1} parent=1 // pred_check_branch
      %540 = sbr.rel (0) target = $region65
    $region64: #{tpu_custom_call.1} parent=1 // pred_region
      %s542 = ssub.s32 128, 128
      %543 = vsyncadd [#allocation4], %s542
      %s545 = sshll.u32 [#allocation10], 4
      %s546 = int_to_ptr.vmem [resolvable:$true] %s545
      %548 = dma.vmem_to_hbm [thread:$0]  %s546, 128, %s11, [#allocation4]
    $region65: #{tpu_custom_call.1} parent=1 // pred_fallthru
      _
    // Predicated region
    $region66: #{tpu_custom_call.1} parent=1 // pred_check
      _
    $region67: #{tpu_custom_call.1} parent=1 // pred_check_branch
      %550 = sbr.rel (0) target = $region69
    $region68: #{tpu_custom_call.1} parent=1 // pred_region
      %551 = dma.done [#allocation4], 128
    $region69: #{tpu_custom_call.1} parent=1 // pred_fallthru
      _
    %552 = vsyncpa [#allocation3], 1
    %553 = vsyncpa [#allocation6], 1
    %554 = vsyncpa [#allocation9], 1
    %555 = vsyncpa [#allocation4], 1

</llo_original>
